<compile_context>
chip_gen: v7x
topology: tpu7x:2x2x1
jax: 0.10.0
libtpu: 0.0.40
codegen_flags: <defaults>
</compile_context>

<pallas_src>
import functools
import math

import jax
import jax.numpy as jnp
from jax.experimental import pallas as pl
from jax.experimental.pallas import tpu as pltpu

_LANE = 128   # feature dims padded to multiples of the 128-lane vreg width
_SUB16 = 16   # bf16 sublane packing: node dim padded to a multiple of 16
_TM = 128     # row-tile size for the streamed (large-N) path


def _round_up(n, m):
    return ((n + m - 1) // m) * m


def _pad2d(a, rows, cols):
    return jnp.pad(a, ((0, rows - a.shape[0]), (0, cols - a.shape[1])))


def _device_vmem_budget_bytes():
    """~80% of physical VMEM (v5e/v6e: 128 MiB, v7x: 64 MiB), with fallback."""
    try:
        info = pltpu.get_tpu_info()
        cap = int(getattr(info, "vmem_capacity_bytes"))
    except Exception:  # not on TPU / API unavailable -> conservative default
        cap = 64 << 20
    return max(int(cap * 0.8), 16 << 20)


_VMEM_BUDGET = _device_vmem_budget_bytes()


def _fused_resident_bytes(n_p, f_p, h1_p, h2_p):
    """VMEM residency estimate for the fused resident-adj kernel."""
    adj_b = n_p * n_p * 2                          # bf16 scratch, single-buffered
    blocked = (n_p * f_p * 2                       # x (bf16)
               + f_p * h1_p * 2 + h1_p * h2_p * 2  # W1, W2 (bf16)
               + (h1_p + h2_p) * 4                 # biases (f32)
               + n_p * h2_p * 4)                   # output (f32)
    inter = n_p * (2 * h1_p + h2_p) * 4            # s1, h1, s2 intermediates (f32)
    return adj_b + 2 * blocked + inter             # BlockSpec operands double-buffered


# ---------------------------------------------------------------------------
# Fused resident-adj kernel (small/medium N): one launch, adj DMA'd once and
# overlapped with x@W1 via a manual async copy into a single VMEM buffer.
# ---------------------------------------------------------------------------
def _fgcn_fused_kernel(adj_hbm, x_ref, w1_ref, b1_ref, w2_ref, b2_ref, o_ref,
                       adj_vmem, sem):
    # Kick off the adj HBM->VMEM copy immediately; it overlaps x@W1 below.
    cp = pltpu.make_async_copy(adj_hbm, adj_vmem, sem)
    cp.start()

    # ---- layer 1 support: s1 = x @ W1 (bf16 in, f32 accumulate) ----
    s1 = jnp.dot(x_ref[...], w1_ref[...], preferred_element_type=jnp.float32)

    cp.wait()
    adj = adj_vmem[...]                                               # bf16 (Np, Np)

    # ---- layer 1 aggregate + bias + ReLU ----
    h1 = jnp.dot(adj, s1.astype(jnp.bfloat16),
                 preferred_element_type=jnp.float32) + b1_ref[...]
    h1 = jnp.maximum(h1, 0.0)
    # TODO(synk): F.dropout(training=True) path not implemented; eval-mode
    # identity (add pltpu.prng_seed/prng_random_bits masking for training).

    # ---- layer 2 ----
    s2 = jnp.dot(h1.astype(jnp.bfloat16), w2_ref[...],
                 preferred_element_type=jnp.float32)
    out = jnp.dot(adj, s2.astype(jnp.bfloat16),
                  preferred_element_type=jnp.float32) + b2_ref[...]
    o_ref[...] = out.astype(o_ref.dtype)


def _fused_path(adj, feat, w1_p, b1_p, w2_p, b2_p, h2):
    n = adj.shape[0]
    f_p, h1_p = w1_p.shape
    h2_p = w2_p.shape[1]
    n_p = _round_up(n, _SUB16)

    adj_p = _pad2d(adj.astype(jnp.bfloat16), n_p, n_p)
    x_p = _pad2d(feat.astype(jnp.bfloat16), n_p, f_p)

    flops = 2 * (n_p * f_p * h1_p + n_p * n_p * h1_p
                 + n_p * h1_p * h2_p + n_p * n_p * h2_p)
    bytes_accessed = (2 * (adj_p.size + x_p.size + w1_p.size + w2_p.size)
                      + 4 * (b1_p.size + b2_p.size) + 4 * n_p * h2_p)
    cost = pl.CostEstimate(flops=int(flops), transcendentals=0,
                           bytes_accessed=int(bytes_accessed))

    vmem_limit = int(min(max(_fused_resident_bytes(n_p, f_p, h1_p, h2_p)
                             + (2 << 20), 4 << 20), _VMEM_BUDGET))

    out_p = pl.pallas_call(
        _fgcn_fused_kernel,
        out_shape=jax.ShapeDtypeStruct((n_p, h2_p), jnp.float32),
        grid=(1,),
        in_specs=[
            pl.BlockSpec(memory_space=pl.ANY),              # adj: manual DMA
            pl.BlockSpec((n_p, f_p), lambda i: (0, 0)),     # x
            pl.BlockSpec((f_p, h1_p), lambda i: (0, 0)),    # W1
            pl.BlockSpec((1, h1_p), lambda i: (0, 0)),      # b1
            pl.BlockSpec((h1_p, h2_p), lambda i: (0, 0)),   # W2
            pl.BlockSpec((1, h2_p), lambda i: (0, 0)),      # b2
        ],
        out_specs=pl.BlockSpec((n_p, h2_p), lambda i: (0, 0)),
        scratch_shapes=[pltpu.VMEM((n_p, n_p), jnp.bfloat16),
                        pltpu.SemaphoreType.DMA(())],
        compiler_params=pltpu.CompilerParams(
            dimension_semantics=("arbitrary",),
            vmem_limit_bytes=vmem_limit),
        cost_estimate=cost,
    )(adj_p, x_p, w1_p, b1_p, w2_p, b2_p)

    return out_p[:n, :h2]


# ---------------------------------------------------------------------------
# Row-streamed path (large N): two pallas_calls per layer.
#   support = x @ W      (row-tiled, W resident)
#   out     = adj_rows @ support + b  [+ ReLU]   (adj streamed as (TM, N) blocks)
# VMEM is O(TM*N); the "parallel" axis uses both v7x TensorCores.
# ---------------------------------------------------------------------------
def _support_kernel(x_ref, w_ref, s_ref):
    s_ref[...] = jnp.dot(x_ref[...], w_ref[...],
                         preferred_element_type=jnp.float32).astype(s_ref.dtype)


def _aggregate_kernel(adj_ref, s_ref, b_ref, o_ref, *, relu):
    out = jnp.dot(adj_ref[...], s_ref[...],
                  preferred_element_type=jnp.float32) + b_ref[...]
    if relu:
        out = jnp.maximum(out, 0.0)
    o_ref[...] = out.astype(o_ref.dtype)


def _support_matmul(x_p, w_p, tm, vmem_limit):
    n_p, f_p = x_p.shape
    h_p = w_p.shape[1]
    return pl.pallas_call(
        _support_kernel,
        out_shape=jax.ShapeDtypeStruct((n_p, h_p), jnp.bfloat16),
        grid=(n_p // tm,),
        in_specs=[pl.BlockSpec((tm, f_p), lambda i: (i, 0)),
                  pl.BlockSpec((f_p, h_p), lambda i: (0, 0))],
        out_specs=pl.BlockSpec((tm, h_p), lambda i: (i, 0)),
        compiler_params=pltpu.CompilerParams(
            dimension_semantics=("parallel",),
            vmem_limit_bytes=vmem_limit),
    )(x_p, w_p)


def _aggregate(adj_p, s_p, b_p, *, relu, tm, out_dtype, vmem_limit):
    n_p = adj_p.shape[0]
    h_p = s_p.shape[1]
    kernel = functools.partial(_aggregate_kernel, relu=relu)
    return pl.pallas_call(
        kernel,
        out_shape=jax.ShapeDtypeStruct((n_p, h_p), out_dtype),
        grid=(n_p // tm,),
        in_specs=[pl.BlockSpec((tm, n_p), lambda i: (i, 0)),   # adj row block
                  pl.BlockSpec((n_p, h_p), lambda i: (0, 0)),  # support (resident)
                  pl.BlockSpec((1, h_p), lambda i: (0, 0))],   # bias
        out_specs=pl.BlockSpec((tm, h_p), lambda i: (i, 0)),
        compiler_params=pltpu.CompilerParams(
            dimension_semantics=("parallel",),
            vmem_limit_bytes=vmem_limit),
    )(adj_p, s_p, b_p)


def _streaming_path(adj, feat, w1_p, b1_p, w2_p, b2_p, h2, tm=_TM):
    n = adj.shape[0]
    f_p, h1_p = w1_p.shape
    h2_p = w2_p.shape[1]
    n_p = _round_up(n, tm)

    # Padding invariant: padded adj COLUMNS are zero, so the garbage rows of
    # h1/support2 produced for padded nodes never reach valid output rows.
    adj_p = _pad2d(adj.astype(jnp.bfloat16), n_p, n_p)
    x_p = _pad2d(feat.astype(jnp.bfloat16), n_p, f_p)

    h_max = max(h1_p, h2_p)
    vmem_limit = int(min(max(
        2 * (tm * n_p * 2            # adj row blocks (double-buffered, bf16)
             + n_p * h_max * 2       # resident support (bf16)
             + tm * h_max * 4        # output blocks (f32)
             + tm * f_p * 2          # x / h1 row blocks (bf16)
             + f_p * h_max * 2)      # resident weight (bf16)
        + (2 << 20), 8 << 20), _VMEM_BUDGET))

    s1 = _support_matmul(x_p, w1_p, tm, vmem_limit)                 # (n_p, h1_p) bf16
    h1 = _aggregate(adj_p, s1, b1_p, relu=True, tm=tm,
                    out_dtype=jnp.bfloat16, vmem_limit=vmem_limit)  # (n_p, h1_p) bf16
    # TODO(synk): training-mode dropout would be applied to h1 here.
    s2 = _support_matmul(h1, w2_p, tm, vmem_limit)                  # (n_p, h2_p) bf16
    out_p = _aggregate(adj_p, s2, b2_p, relu=False, tm=tm,
                       out_dtype=jnp.float32, vmem_limit=vmem_limit)
    return out_p[:n, :h2]


# ---------------------------------------------------------------------------
# Public entry points
# ---------------------------------------------------------------------------
@functools.partial(jax.jit, static_argnames=("h2", "streaming"))
def _fgcn_jit(adj, feat, w1_p, b1_p, w2_p, b2_p, *, h2, streaming):
    n = adj.shape[0]
    f_p, h1_p = w1_p.shape
    h2_p = w2_p.shape[1]
    if streaming is None:
        n_p = _round_up(n, _SUB16)
        streaming = (_fused_resident_bytes(n_p, f_p, h1_p, h2_p)
                     + (2 << 20)) > _VMEM_BUDGET
    if streaming:
        return _streaming_path(adj, feat, w1_p, b1_p, w2_p, b2_p, h2)
    return _fused_path(adj, feat, w1_p, b1_p, w2_p, b2_p, h2)


def prepare_fgcn_params(params):
    """Pad + cast FGCN parameters once (hoisted out of the per-call path)."""
    f_in, h1 = params["w1"].shape
    h2 = params["w2"].shape[1]
    f_p = _round_up(f_in, _LANE)
    h1_p = _round_up(h1, _LANE)
    h2_p = _round_up(h2, _LANE)
    return {
        "w1": _pad2d(params["w1"].astype(jnp.bfloat16), f_p, h1_p),
        "b1": _pad2d(params["b1"].reshape(1, -1).astype(jnp.float32), 1, h1_p),
        "w2": _pad2d(params["w2"].astype(jnp.bfloat16), h1_p, h2_p),
        "b2": _pad2d(params["b2"].reshape(1, -1).astype(jnp.float32), 1, h2_p),
    }


def fgcn_forward(prepared, drug_graph, drug_sim_feat, nhid2, streaming=None):
    """FGCN.forward(drug_graph, drug_sim_feat) -> emb1 (Pallas TPU kernels)."""
    return _fgcn_jit(drug_graph, drug_sim_feat,
                     prepared["w1"], prepared["b1"],
                     prepared["w2"], prepared["b2"],
                     h2=nhid2, streaming=streaming)


def init_fgcn_params(key, fdim_drug, nhid1, nhid2):
    """uniform(-1/sqrt(out_features), 1/sqrt(out_features)) like reset_parameters."""
    k1, k2, k3, k4 = jax.random.split(key, 4)
    stdv1 = 1.0 / math.sqrt(nhid1)
    stdv2 = 1.0 / math.sqrt(nhid2)
    return {
        "w1": jax.random.uniform(k1, (fdim_drug, nhid1), jnp.float32,
                                 minval=-stdv1, maxval=stdv1),
        "b1": jax.random.uniform(k2, (nhid1,), jnp.float32,
                                 minval=-stdv1, maxval=stdv1),
        "w2": jax.random.uniform(k3, (nhid1, nhid2), jnp.float32,
                                 minval=-stdv2, maxval=stdv2),
        "b2": jax.random.uniform(k4, (nhid2,), jnp.float32,
                                 minval=-stdv2, maxval=stdv2),
    }


def fgcn_reference(params, drug_graph, drug_sim_feat):
    """Plain-JAX f32 reference for correctness check."""
    h1 = jax.nn.relu(drug_graph @ (drug_sim_feat @ params["w1"]) + params["b1"])
    return drug_graph @ (h1 @ params["w2"]) + params["b2"]


if __name__ == "__main__":
    def run_case(N, fdim_drug, nhid1, nhid2, streaming, key):
        k_params, k_adj, k_feat = jax.random.split(key, 3)
        params = init_fgcn_params(k_params, fdim_drug, nhid1, nhid2)
        prepared = prepare_fgcn_params(params)

        # Row-normalized symmetric-ish adjacency (dense stand-in for spmm input).
        adj_raw = jax.random.uniform(k_adj, (N, N), jnp.float32)
        adj_raw = (adj_raw + adj_raw.T) * 0.5 + jnp.eye(N, dtype=jnp.float32)
        drug_graph = adj_raw / jnp.sum(adj_raw, axis=1, keepdims=True)
        drug_sim_feat = jax.random.normal(k_feat, (N, fdim_drug), jnp.float32)

        emb1 = fgcn_forward(prepared, drug_graph, drug_sim_feat, nhid2,
                            streaming=streaming)
        emb1 = jax.block_until_ready(emb1)

        ref = fgcn_reference(params, drug_graph, drug_sim_feat)
        assert emb1.shape == (N, nhid2), emb1.shape
        max_err = float(jnp.max(jnp.abs(emb1 - ref)))
        # bf16 MXU inputs with f32 accumulation -> relaxed tolerance vs f32 ref.
        assert jnp.allclose(emb1, ref, atol=5e-2, rtol=5e-2), (
            f"mismatch vs reference (max abs err {max_err})")

    key = jax.random.PRNGKey(0)
    k_small, k_large = jax.random.split(key)

    # Small-N fast path: fused single-launch kernel, adj resident in VMEM.
    run_case(N=16, fdim_drug=32, nhid1=32, nhid2=16, streaming=False, key=k_small)
    # Large-N path (exercised here at a modest size): row-streamed, parallel grid.
    run_case(N=200, fdim_drug=64, nhid1=32, nhid2=16, streaming=True, key=k_large)

    print("KERNEL_OK")
</pallas_src>

<mosaic_0001>
module attributes {stable_mosaic.version = 11 : i64} {
  func.func @_fgcn_fused_kernel(%arg0: i32, %arg1: memref<16x16xbf16, #tpu.memory_space<any>>, %arg2: memref<16x128xbf16, #tpu.memory_space<vmem>>, %arg3: memref<128x128xbf16, #tpu.memory_space<vmem>>, %arg4: memref<1x128xf32, #tpu.memory_space<vmem>>, %arg5: memref<128x128xbf16, #tpu.memory_space<vmem>>, %arg6: memref<1x128xf32, #tpu.memory_space<vmem>>, %arg7: memref<16x128xf32, #tpu.memory_space<vmem>>, %arg8: memref<16x16xbf16, #tpu.memory_space<vmem>>, %arg9: memref<!tpu.dma_semaphore, #tpu.memory_space<semaphore_mem>>) attributes {dimension_semantics = [#tpu.dimension_semantics<arbitrary>], iteration_bounds = array<i64: 1>, scalar_prefetch = 0 : i64, scratch_operands = 2 : i64, tpu.core_type = #tpu.core_type<tc>, window_params = [{}, {pipeline_mode = #tpu.pipeline_mode<synchronous>, transform_indices = @transform_1, window_bounds = array<i64: 16, 128>}, {pipeline_mode = #tpu.pipeline_mode<synchronous>, transform_indices = @transform_2, window_bounds = array<i64: 128, 128>}, {pipeline_mode = #tpu.pipeline_mode<synchronous>, transform_indices = @transform_3, window_bounds = array<i64: 1, 128>}, {pipeline_mode = #tpu.pipeline_mode<synchronous>, transform_indices = @transform_4, window_bounds = array<i64: 128, 128>}, {pipeline_mode = #tpu.pipeline_mode<synchronous>, transform_indices = @transform_5, window_bounds = array<i64: 1, 128>}, {pipeline_mode = #tpu.pipeline_mode<synchronous>, transform_indices = @transform_6, window_bounds = array<i64: 16, 128>}]} {
    tpu.enqueue_dma source(%arg1 : memref<16x16xbf16, #tpu.memory_space<any>>) target(%arg8 : memref<16x16xbf16, #tpu.memory_space<vmem>>) target_semaphore(%arg9 : memref<!tpu.dma_semaphore, #tpu.memory_space<semaphore_mem>>)
    %c0 = arith.constant 0 : index
    %c0_0 = arith.constant 0 : index
    %0 = vector.load %arg2[%c0, %c0_0] : memref<16x128xbf16, #tpu.memory_space<vmem>>, vector<16x128xbf16>
    %c0_1 = arith.constant 0 : index
    %c0_2 = arith.constant 0 : index
    %1 = vector.load %arg3[%c0_1, %c0_2] : memref<128x128xbf16, #tpu.memory_space<vmem>>, vector<128x128xbf16>
    %cst = arith.constant dense<0.000000e+00> : vector<16x128xf32>
    %2 = tpu.matmul %0, %1, %cst {dimension_numbers = #tpu.dot_dimension_numbers<[1], [0], [0], [1], [0, 0, 1, 1], [], []>} : vector<16x128xbf16>, vector<128x128xbf16>, vector<16x128xf32> -> vector<16x128xf32>
    tpu.wait_dma2 semaphore(%arg9 : memref<!tpu.dma_semaphore, #tpu.memory_space<semaphore_mem>>) src(%arg1 : memref<16x16xbf16, #tpu.memory_space<any>>) dst(%arg8 : memref<16x16xbf16, #tpu.memory_space<vmem>>)
    %c0_3 = arith.constant 0 : index
    %c0_4 = arith.constant 0 : index
    %3 = vector.load %arg8[%c0_3, %c0_4] : memref<16x16xbf16, #tpu.memory_space<vmem>>, vector<16x16xbf16>
    %4 = arith.truncf %2 : vector<16x128xf32> to vector<16x128xbf16>
    %cst_5 = arith.constant dense<0.000000e+00> : vector<16x128xf32>
    %5 = tpu.matmul %3, %4, %cst_5 {dimension_numbers = #tpu.dot_dimension_numbers<[1], [0], [0], [1], [0, 0, 1, 1], [], []>} : vector<16x16xbf16>, vector<16x128xbf16>, vector<16x128xf32> -> vector<16x128xf32>
    %c0_6 = arith.constant 0 : index
    %c0_7 = arith.constant 0 : index
    %6 = vector.load %arg4[%c0_6, %c0_7] : memref<1x128xf32, #tpu.memory_space<vmem>>, vector<1x128xf32>
    %7 = vector.broadcast %6 : vector<1x128xf32> to vector<16x128xf32>
    %8 = arith.addf %5, %7 : vector<16x128xf32>
    %cst_8 = arith.constant 0.000000e+00 : f32
    %9 = vector.broadcast %cst_8 : f32 to vector<16x128xf32>
    %10 = arith.maximumf %8, %9 : vector<16x128xf32>
    %11 = arith.truncf %10 : vector<16x128xf32> to vector<16x128xbf16>
    %c0_9 = arith.constant 0 : index
    %c0_10 = arith.constant 0 : index
    %12 = vector.load %arg5[%c0_9, %c0_10] : memref<128x128xbf16, #tpu.memory_space<vmem>>, vector<128x128xbf16>
    %cst_11 = arith.constant dense<0.000000e+00> : vector<16x128xf32>
    %13 = tpu.matmul %11, %12, %cst_11 {dimension_numbers = #tpu.dot_dimension_numbers<[1], [0], [0], [1], [0, 0, 1, 1], [], []>} : vector<16x128xbf16>, vector<128x128xbf16>, vector<16x128xf32> -> vector<16x128xf32>
    %14 = arith.truncf %13 : vector<16x128xf32> to vector<16x128xbf16>
    %cst_12 = arith.constant dense<0.000000e+00> : vector<16x128xf32>
    %15 = tpu.matmul %3, %14, %cst_12 {dimension_numbers = #tpu.dot_dimension_numbers<[1], [0], [0], [1], [0, 0, 1, 1], [], []>} : vector<16x16xbf16>, vector<16x128xbf16>, vector<16x128xf32> -> vector<16x128xf32>
    %c0_13 = arith.constant 0 : index
    %c0_14 = arith.constant 0 : index
    %16 = vector.load %arg6[%c0_13, %c0_14] : memref<1x128xf32, #tpu.memory_space<vmem>>, vector<1x128xf32>
    %17 = vector.broadcast %16 : vector<1x128xf32> to vector<16x128xf32>
    %18 = arith.addf %15, %17 : vector<16x128xf32>
    %c0_15 = arith.constant 0 : index
    %c0_16 = arith.constant 0 : index
    %19 = vector.load %arg7[%c0_15, %c0_16] : memref<16x128xf32, #tpu.memory_space<vmem>>, vector<16x128xf32>
    tpu.vector_store %arg7[%c0_15, %c0_16], %18 {strides = array<i32>} : memref<16x128xf32, #tpu.memory_space<vmem>>, vector<16x128xf32>,
    return
  }
  func.func @transform_1(%arg0: i32) -> (i32, i32) {
    %c0_i32 = arith.constant 0 : i32
    %c0_i32_0 = arith.constant 0 : i32
    %c0_i32_1 = arith.constant 0 : i32
    return %c0_i32, %c0_i32_0 : i32, i32
  }
  func.func @transform_2(%arg0: i32) -> (i32, i32) {
    %c0_i32 = arith.constant 0 : i32
    %c0_i32_0 = arith.constant 0 : i32
    %c0_i32_1 = arith.constant 0 : i32
    return %c0_i32, %c0_i32_0 : i32, i32
  }
  func.func @transform_3(%arg0: i32) -> (i32, i32) {
    %c0_i32 = arith.constant 0 : i32
    %c0_i32_0 = arith.constant 0 : i32
    %c0_i32_1 = arith.constant 0 : i32
    return %c0_i32, %c0_i32_0 : i32, i32
  }
  func.func @transform_4(%arg0: i32) -> (i32, i32) {
    %c0_i32 = arith.constant 0 : i32
    %c0_i32_0 = arith.constant 0 : i32
    %c0_i32_1 = arith.constant 0 : i32
    return %c0_i32, %c0_i32_0 : i32, i32
  }
  func.func @transform_5(%arg0: i32) -> (i32, i32) {
    %c0_i32 = arith.constant 0 : i32
    %c0_i32_0 = arith.constant 0 : i32
    %c0_i32_1 = arith.constant 0 : i32
    return %c0_i32, %c0_i32_0 : i32, i32
  }
  func.func @transform_6(%arg0: i32) -> (i32, i32) {
    %c0_i32 = arith.constant 0 : i32
    %c0_i32_0 = arith.constant 0 : i32
    %c0_i32_1 = arith.constant 0 : i32
    return %c0_i32, %c0_i32_0 : i32, i32
  }
}

</mosaic_0001>

<llo_original>
// kernel: _fgcn_jit.1
$region0: #{_fgcn_jit.1}
  #allocation0 [shape = 'u32[]', space=smem, size = 0x4, offset = 0x4, fixed_abs, tag = 'smem constant byte address 0x4 - core index']
  #allocation1 [shape = 'u32[144,128]{1,0:T(1,128)}', space=vmem, size = 0x12000, scoped, tag = 'internal scratch']
  #allocation2 [shape = 'bf16[16,16]{1,0:T(16,128)(2,1)}', space=vmem, size = 0x1000, scoped, tag = 'scratch operand']
  #allocation3 [shape = 's32[1]{0}', space=sflag, size = 0x4, scoped, tag = 'scratch operand']
  #allocation8 [shape = 's32[]', space=sflag, size = 0x4, offset = 0, fixed_abs, tag = 'sflag constant byte address 0x0 - dummy sync flag']
  %s0 = inlined_call_operand.vmem [shape: bf16[16,16], index: 0, kind: input, shape index: {}]
  %s1 = inlined_call_operand.vmem [shape: bf16[16,128], index: 1, kind: input, shape index: {}]
  %s2 = inlined_call_operand.vmem [shape: bf16[128,128], index: 2, kind: input, shape index: {}]
  %s3 = inlined_call_operand.vmem [shape: f32[1,128], index: 3, kind: input, shape index: {}]
  %s4 = inlined_call_operand.hbm [shape: bf16[128,128], index: 4, kind: input, shape index: {}]
  %s5 = inlined_call_operand.vmem [shape: f32[1,128], index: 5, kind: input, shape index: {}]
  %s6 = inlined_call_operand.hbm [shape: f32[16,128], index: 6, kind: output, shape index: {}]
  %s7 = sld [smem:[#allocation0]]
  $region68: #{_fgcn_jit.1} parent=0
    _
  %s9 = ssub.s32 1, %s7
  %s10 = scalar_select 0, %s9, %s7
  $region1: #{_fgcn_jit.1} parent=0
    #allocation4 [shape = 'u8[32768]{0}', space=vmem, size = 0x8000, scoped, tag = 'input window, operand 4, single buffered']
    #allocation5 [shape = 's32[1]{0}', space=sflag, size = 0x4, scoped, tag = 'scoped memory for _fgcn_jit.1']
    #allocation6 [shape = 's32[1]{0}', space=sflag, size = 0x4, scoped, tag = 'scoped memory for _fgcn_jit.1']
    #allocation7 [shape = 'u8[8192]{0}', space=vmem, size = 0x2000, scoped, tag = 'output window, operand 0, single buffered']
    %11 = vsyncpa [#allocation5], 0
    %12 = vsyncpa [#allocation6], 0
    // Predicated region
    $region2: #{_fgcn_jit.1} parent=1 // pred_check
      _
    $region3: #{_fgcn_jit.1} parent=1 // pred_check_branch
      %14 = sbr.rel (0) target = $region5
    $region4: #{_fgcn_jit.1} parent=1 // pred_region
      _
    $region5: #{_fgcn_jit.1} parent=1 // pred_fallthru
      _
    // Predicated region
    $region6: #{_fgcn_jit.1} parent=1 // pred_check
      _
    $region7: #{_fgcn_jit.1} parent=1 // pred_check_branch
      %16 = sbr.rel (0) target = $region9
    $region8: #{_fgcn_jit.1} parent=1 // pred_region
      _
    $region9: #{_fgcn_jit.1} parent=1 // pred_fallthru
      _
    // Predicated region
    $region10: #{_fgcn_jit.1} parent=1 // pred_check
      _
    $region11: #{_fgcn_jit.1} parent=1 // pred_check_branch
      %18 = sbr.rel (0) target = $region13
    $region12: #{_fgcn_jit.1} parent=1 // pred_region
      _
    $region13: #{_fgcn_jit.1} parent=1 // pred_fallthru
      _
    // Predicated region
    $region14: #{_fgcn_jit.1} parent=1 // pred_check
      _
    $region15: #{_fgcn_jit.1} parent=1 // pred_check_branch
      %20 = sbr.rel (0) target = $region17
    $region16: #{_fgcn_jit.1} parent=1 // pred_region
      %s22 = ssub.s32 1024, 1024
      %23 = vsyncadd [#allocation5], %s22
      %s24 = sshll.u32 [#allocation4], 4
      %s25 = int_to_ptr.vmem [resolvable:$true] %s24
      %30 = dma.hbm_to_vmem [thread:$0]  %s4, 1024, %s25, [#allocation5], 64, 64, 4
    $region17: #{_fgcn_jit.1} parent=1 // pred_fallthru
      _
    // Predicated region
    $region18: #{_fgcn_jit.1} parent=1 // pred_check
      _
    $region19: #{_fgcn_jit.1} parent=1 // pred_check_branch
      %32 = sbr.rel (0) target = $region21
    $region20: #{_fgcn_jit.1} parent=1 // pred_region
      _
    $region21: #{_fgcn_jit.1} parent=1 // pred_fallthru
      _
    // Predicated region
    $region22: #{_fgcn_jit.1} parent=1 // pred_check
      _
    $region23: #{_fgcn_jit.1} parent=1 // pred_check_branch
      %34 = sbr.rel (0) target = $region25
    $region24: #{_fgcn_jit.1} parent=1 // pred_region
      %35 = dma.done [#allocation5], 1024
    $region25: #{_fgcn_jit.1} parent=1 // pred_fallthru
      _
    %p38 = scmp.lt.u32.totalorder 8, 8
    %p39 = pneg %p38
    // Predicated region
    $region26: #{_fgcn_jit.1} parent=1 // pred_check
      _
    $region27: #{_fgcn_jit.1} parent=1 // pred_check_branch
      %41 = sbr.rel (%p38) target = $region29
    $region28: #{_fgcn_jit.1} parent=1 // pred_region
      %s56 = sand.u32 8, 7
      %p57 = scmp.eq.s32.totalorder %s56, 0
      // Predicated region
      $region41: #{_fgcn_jit.1} parent=28 // pred_check
        %p58 = pneg %p57
      $region42: #{_fgcn_jit.1} parent=28 // pred_check_branch
        %60 = sbr.rel (%p58) target = $region44
      $region43: #{_fgcn_jit.1} parent=28 // pred_region
        loop: start=0, step=1, limit=1
        $region45: #{_fgcn_jit.1} parent=43 // loop_pre_header
          _
        $region46: #{_fgcn_jit.1} parent=43 // loop_header
          %s62 = sphi 0, %s66
          %p63 = scmp.ge.s32.totalorder %s62, 1
          %s67 = sphi %s0, %s0
          %s68 = sphi [#allocation2], [#allocation2]
        $region47: #{_fgcn_jit.1} parent=43 // loop_header_branch
          %65 = sbr.rel (%p63) target = $region51
        $region48: #{_fgcn_jit.1} parent=43 // loop_body
          %v69 = vld [vmem:[%s67] sm:$0xff]
          %70 = vst [vmem:[%s68] sm:$0xff] %v69
        $region49: #{_fgcn_jit.1} parent=43 // loop_footer
          %s66 = sadd.s32 1, %s62
        $region50: #{_fgcn_jit.1} parent=43 // loop_footer_branch
          %61 = sbr.rel target = $region46
        $region51: #{_fgcn_jit.1} parent=43 // loop_exit
          _
      $region44: #{_fgcn_jit.1} parent=28 // pred_fallthru
        _
      %p71 = pneg %p57
      // Predicated region
      $region52: #{_fgcn_jit.1} parent=28 // pred_check
        _
      $region53: #{_fgcn_jit.1} parent=28 // pred_check_branch
        %73 = sbr.rel (%p57) target = $region55
      $region54: #{_fgcn_jit.1} parent=28 // pred_region
        %s74 = sand.u32 8, 7
      $region55: #{_fgcn_jit.1} parent=28 // pred_fallthru
        _
    $region29: #{_fgcn_jit.1} parent=1 // pred_fallthru
      _
    // Predicated region
    $region30: #{_fgcn_jit.1} parent=1 // pred_check
      %p42 = pneg %p38
    $region31: #{_fgcn_jit.1} parent=1 // pred_check_branch
      %44 = sbr.rel (%p42) target = $region33
    $region32: #{_fgcn_jit.1} parent=1 // pred_region
      %s45 = sshllo.u32 0, 8
      loop: start=0, step=1, limit=1
      $region34: #{_fgcn_jit.1} parent=32 // loop_pre_header
        _
      $region35: #{_fgcn_jit.1} parent=32 // loop_header
        %s47 = sphi 0, %s51
        %p48 = scmp.ge.s32.totalorder %s47, 1
        %s52 = sphi %s0, %s0
        %s53 = sphi [#allocation2], [#allocation2]
      $region36: #{_fgcn_jit.1} parent=32 // loop_header_branch
        %50 = sbr.rel (%p48) target = $region40
      $region37: #{_fgcn_jit.1} parent=32 // loop_body
        %v54 = vld [vmem:[%s52] sm:%s45]
        %55 = vst [vmem:[%s53] sm:%s45] %v54
      $region38: #{_fgcn_jit.1} parent=32 // loop_footer
        %s51 = sadd.s32 1, %s47
      $region39: #{_fgcn_jit.1} parent=32 // loop_footer_branch
        %46 = sbr.rel target = $region35
      $region40: #{_fgcn_jit.1} parent=32 // loop_exit
        _
    $region33: #{_fgcn_jit.1} parent=1 // pred_fallthru
      _
    // Predicated region
    $region56: #{_fgcn_jit.1} parent=1 // pred_check
      _
    $region57: #{_fgcn_jit.1} parent=1 // pred_check_branch
      %77 = sbr.rel (0) target = $region59
    $region58: #{_fgcn_jit.1} parent=1 // pred_region
      %78 = vsyncadd [#allocation3], 128
    $region59: #{_fgcn_jit.1} parent=1 // pred_fallthru
      _
    %v79 = vld [vmem:[%s1] sm:$0xf]
    %v80 = vld [vmem:[%s1 + $0x4] sm:$0xf]
    %v81 = vld [vmem:[%s2] sm:$0xf]
    %v82 = vld [vmem:[%s2 + $0x4] sm:$0xf]
    %v83 = vld [vmem:[%s2 + $0x8] sm:$0xf]
    %v84 = vld [vmem:[%s2 + $0xc] sm:$0xf]
    %v85 = vld [vmem:[%s2 + $0x10] sm:$0xf]
    %v86 = vld [vmem:[%s2 + $0x14] sm:$0xf]
    %v87 = vld [vmem:[%s2 + $0x18] sm:$0xf]
    %v88 = vld [vmem:[%s2 + $0x1c] sm:$0xf]
    %v89 = vld [vmem:[%s2 + $0x20] sm:$0xf]
    %v90 = vld [vmem:[%s2 + $0x24] sm:$0xf]
    %v91 = vld [vmem:[%s2 + $0x28] sm:$0xf]
    %v92 = vld [vmem:[%s2 + $0x2c] sm:$0xf]
    %v93 = vld [vmem:[%s2 + $0x30] sm:$0xf]
    %v94 = vld [vmem:[%s2 + $0x34] sm:$0xf]
    %v95 = vld [vmem:[%s2 + $0x38] sm:$0xf]
    %v96 = vld [vmem:[%s2 + $0x3c] sm:$0xf]
    %v99 = vunpack.c.l.b16 %v79
    %v100 = vunpack.c.l.b16 %v80
    %v101 = vpack.c.b16 %v100, %v99
    %v119 = vunpack.c.l.b16 %v81
    %v120 = vunpack.c.l.b16 %v82
    %v121 = vunpack.c.l.b16 %v83
    %v122 = vunpack.c.l.b16 %v84
    %v123 = vunpack.c.l.b16 %v85
    %v124 = vunpack.c.l.b16 %v86
    %v125 = vunpack.c.l.b16 %v87
    %v126 = vunpack.c.l.b16 %v88
    %v127 = vunpack.c.l.b16 %v89
    %v128 = vunpack.c.l.b16 %v90
    %v129 = vunpack.c.l.b16 %v91
    %v130 = vunpack.c.l.b16 %v92
    %v131 = vunpack.c.l.b16 %v93
    %v132 = vunpack.c.l.b16 %v94
    %v133 = vunpack.c.l.b16 %v95
    %v134 = vunpack.c.l.b16 %v96
    %v135 = vpack.c.b16 %v120, %v119
    %v136 = vpack.c.b16 %v122, %v121
    %v137 = vpack.c.b16 %v124, %v123
    %v138 = vpack.c.b16 %v126, %v125
    %v139 = vpack.c.b16 %v128, %v127
    %v140 = vpack.c.b16 %v130, %v129
    %v141 = vpack.c.b16 %v132, %v131
    %v142 = vpack.c.b16 %v134, %v133
    %151 = vmatprep.subr.bf16.mxu0 0
    %152 = vmatpush1.bf16.msra.mxu0 %v135
    %153 = vmatprep.subr.bf16.mxu0 0
    %154 = vmatpush1.bf16.msra.mxu0 %v136
    %155 = vmatprep.subr.bf16.mxu0 0
    %156 = vmatpush1.bf16.msra.mxu0 %v137
    %157 = vmatprep.subr.bf16.mxu0 0
    %158 = vmatpush1.bf16.msra.mxu0 %v138
    %159 = vmatprep.subr.bf16.mxu0 0
    %160 = vmatpush1.bf16.msra.mxu0 %v139
    %161 = vmatprep.subr.bf16.mxu0 0
    %162 = vmatpush1.bf16.msra.mxu0 %v140
    %163 = vmatprep.subr.bf16.mxu0 0
    %164 = vmatpush1.bf16.msra.mxu0 %v141
    %165 = vmatprep.subr.bf16.mxu0 0
    %166 = vmatpush1.bf16.msra.mxu0 %v142
    %167 = vmatprep.subr.bf16.mxu0 0
    %168 = vmatpush1.bf16.msra.mxu0 0
    %169 = vmatprep.subr.bf16.mxu0 0
    %170 = vmatpush1.bf16.msra.mxu0 0
    %171 = vmatprep.subr.bf16.mxu0 0
    %172 = vmatpush1.bf16.msra.mxu0 0
    %173 = vmatprep.subr.bf16.mxu0 0
    %174 = vmatpush1.bf16.msra.mxu0 0
    %175 = vmatprep.subr.bf16.mxu0 0
    %176 = vmatpush1.bf16.msra.mxu0 0
    %177 = vmatprep.subr.bf16.mxu0 0
    %178 = vmatpush1.bf16.msra.mxu0 0
    %179 = vmatprep.subr.bf16.mxu0 0
    %180 = vmatpush1.bf16.msra.mxu0 0
    %181 = vmatprep.subr.bf16.mxu0 0
    %182 = vmatpush1.bf16.msra.mxu0 0
    %183 = vmatprep.mubr.bf16.mxu0 0
    %184 = vmatmul.mubr.bf16.gmra.mrb[0].mxu0 %v101
    %v185 = vpop.f32.mrb[0].mxu0
    %v186 = vadd.f32 0.0, %v185
    %v187 = vpop.f32.mrb[0].mxu0
    %v188 = vpop.f32.mrb[0].mxu0
    %v189 = vadd.f32 0.0, %v188
    %v190 = vpop.f32.mrb[0].mxu0
    %191 = vdwg.mxu0
    %s192 = smul.u32 4, 2
    %s193 = smul.u32 %s192, 1
    %s194 = sshll.u32 %s193, 4
    %195 = dma.done [#allocation3], %s194
    %v196 = vld [vmem:[#allocation2] sm:$0xff]
    %v197 = vpack.c.bf16 %v189, %v186
    %v198 = vld [vmem:[%s3] sm:$0x1]
    %v200 = vlaneseq
    %v201 = vshrl.u32 %v200, 7
    %v202 = vsub.s32 0, %v201
    %v203 = vrot.slane %v198, %v202
    %vm205 = vcmask 130048
    %v207 = vsel %vm205, %v196, 0
    %209 = vmatprep.subr.bf16.mxu0 0
    %210 = vmatpush1.bf16.msra.mxu0 %v197
    %211 = vmatprep.subr.bf16.mxu0 0
    %212 = vmatpush1.bf16.msra.mxu0 0
    %213 = vmatprep.subr.bf16.mxu0 0
    %214 = vmatpush1.bf16.msra.mxu0 0
    %215 = vmatprep.subr.bf16.mxu0 0
    %216 = vmatpush1.bf16.msra.mxu0 0
    %217 = vmatprep.subr.bf16.mxu0 0
    %218 = vmatpush1.bf16.msra.mxu0 0
    %219 = vmatprep.subr.bf16.mxu0 0
    %220 = vmatpush1.bf16.msra.mxu0 0
    %221 = vmatprep.subr.bf16.mxu0 0
    %222 = vmatpush1.bf16.msra.mxu0 0
    %223 = vmatprep.subr.bf16.mxu0 0
    %224 = vmatpush1.bf16.msra.mxu0 0
    %225 = vmatprep.subr.bf16.mxu0 0
    %226 = vmatpush1.bf16.msra.mxu0 0
    %227 = vmatprep.subr.bf16.mxu0 0
    %228 = vmatpush1.bf16.msra.mxu0 0
    %229 = vmatprep.subr.bf16.mxu0 0
    %230 = vmatpush1.bf16.msra.mxu0 0
    %231 = vmatprep.subr.bf16.mxu0 0
    %232 = vmatpush1.bf16.msra.mxu0 0
    %233 = vmatprep.subr.bf16.mxu0 0
    %234 = vmatpush1.bf16.msra.mxu0 0
    %235 = vmatprep.subr.bf16.mxu0 0
    %236 = vmatpush1.bf16.msra.mxu0 0
    %237 = vmatprep.subr.bf16.mxu0 0
    %238 = vmatpush1.bf16.msra.mxu0 0
    %239 = vmatprep.subr.bf16.mxu0 0
    %240 = vmatpush1.bf16.msra.mxu0 0
    %241 = vmatprep.mubr.bf16.mxu0 0
    %242 = vmatmul.mubr.bf16.gmra.mrb[0].mxu0 %v207
    %v243 = vpop.f32.mrb[0].mxu0
    %v244 = vadd.f32 %v203, %v243
    %v245 = vpop.f32.mrb[0].mxu0
    %v246 = vpop.f32.mrb[0].mxu0
    %v247 = vadd.f32 %v203, %v246
    %v248 = vpop.f32.mrb[0].mxu0
    %249 = vdwg.mxu0
    %v250 = vmax.f32 %v244, 0.0
    %v251 = vmax.f32 %v247, 0.0
    %v252 = vpack.c.bf16 %v251, %v250
    %v253 = vld [vmem:[#allocation4] sm:$0xf]
    %v254 = vld [vmem:[#allocation4 + $0x4] sm:$0xf]
    %v255 = vld [vmem:[#allocation4 + $0x8] sm:$0xf]
    %v256 = vld [vmem:[#allocation4 + $0xc] sm:$0xf]
    %v257 = vld [vmem:[#allocation4 + $0x10] sm:$0xf]
    %v258 = vld [vmem:[#allocation4 + $0x14] sm:$0xf]
    %v259 = vld [vmem:[#allocation4 + $0x18] sm:$0xf]
    %v260 = vld [vmem:[#allocation4 + $0x1c] sm:$0xf]
    %v261 = vld [vmem:[#allocation4 + $0x20] sm:$0xf]
    %v262 = vld [vmem:[#allocation4 + $0x24] sm:$0xf]
    %v263 = vld [vmem:[#allocation4 + $0x28] sm:$0xf]
    %v264 = vld [vmem:[#allocation4 + $0x2c] sm:$0xf]
    %v265 = vld [vmem:[#allocation4 + $0x30] sm:$0xf]
    %v266 = vld [vmem:[#allocation4 + $0x34] sm:$0xf]
    %v267 = vld [vmem:[#allocation4 + $0x38] sm:$0xf]
    %v268 = vld [vmem:[#allocation4 + $0x3c] sm:$0xf]
    %v285 = vunpack.c.l.b16 %v253
    %v286 = vunpack.c.l.b16 %v254
    %v287 = vunpack.c.l.b16 %v255
    %v288 = vunpack.c.l.b16 %v256
    %v289 = vunpack.c.l.b16 %v257
    %v290 = vunpack.c.l.b16 %v258
    %v291 = vunpack.c.l.b16 %v259
    %v292 = vunpack.c.l.b16 %v260
    %v293 = vunpack.c.l.b16 %v261
    %v294 = vunpack.c.l.b16 %v262
    %v295 = vunpack.c.l.b16 %v263
    %v296 = vunpack.c.l.b16 %v264
    %v297 = vunpack.c.l.b16 %v265
    %v298 = vunpack.c.l.b16 %v266
    %v299 = vunpack.c.l.b16 %v267
    %v300 = vunpack.c.l.b16 %v268
    %v301 = vpack.c.b16 %v286, %v285
    %v302 = vpack.c.b16 %v288, %v287
    %v303 = vpack.c.b16 %v290, %v289
    %v304 = vpack.c.b16 %v292, %v291
    %v305 = vpack.c.b16 %v294, %v293
    %v306 = vpack.c.b16 %v296, %v295
    %v307 = vpack.c.b16 %v298, %v297
    %v308 = vpack.c.b16 %v300, %v299
    %317 = vmatprep.subr.bf16.mxu0 0
    %318 = vmatpush1.bf16.msra.mxu0 %v301
    %319 = vmatprep.subr.bf16.mxu0 0
    %320 = vmatpush1.bf16.msra.mxu0 %v302
    %321 = vmatprep.subr.bf16.mxu0 0
    %322 = vmatpush1.bf16.msra.mxu0 %v303
    %323 = vmatprep.subr.bf16.mxu0 0
    %324 = vmatpush1.bf16.msra.mxu0 %v304
    %325 = vmatprep.subr.bf16.mxu0 0
    %326 = vmatpush1.bf16.msra.mxu0 %v305
    %327 = vmatprep.subr.bf16.mxu0 0
    %328 = vmatpush1.bf16.msra.mxu0 %v306
    %329 = vmatprep.subr.bf16.mxu0 0
    %330 = vmatpush1.bf16.msra.mxu0 %v307
    %331 = vmatprep.subr.bf16.mxu0 0
    %332 = vmatpush1.bf16.msra.mxu0 %v308
    %333 = vmatprep.subr.bf16.mxu0 0
    %334 = vmatpush1.bf16.msra.mxu0 0
    %335 = vmatprep.subr.bf16.mxu0 0
    %336 = vmatpush1.bf16.msra.mxu0 0
    %337 = vmatprep.subr.bf16.mxu0 0
    %338 = vmatpush1.bf16.msra.mxu0 0
    %339 = vmatprep.subr.bf16.mxu0 0
    %340 = vmatpush1.bf16.msra.mxu0 0
    %341 = vmatprep.subr.bf16.mxu0 0
    %342 = vmatpush1.bf16.msra.mxu0 0
    %343 = vmatprep.subr.bf16.mxu0 0
    %344 = vmatpush1.bf16.msra.mxu0 0
    %345 = vmatprep.subr.bf16.mxu0 0
    %346 = vmatpush1.bf16.msra.mxu0 0
    %347 = vmatprep.subr.bf16.mxu0 0
    %348 = vmatpush1.bf16.msra.mxu0 0
    %349 = vmatprep.mubr.bf16.mxu0 0
    %350 = vmatmul.mubr.bf16.gmra.mrb[0].mxu0 %v252
    %v351 = vpop.f32.mrb[0].mxu0
    %v352 = vadd.f32 0.0, %v351
    %v353 = vpop.f32.mrb[0].mxu0
    %v354 = vpop.f32.mrb[0].mxu0
    %v355 = vadd.f32 0.0, %v354
    %v356 = vpop.f32.mrb[0].mxu0
    %357 = vdwg.mxu0
    %v358 = vpack.c.bf16 %v355, %v352
    %v359 = vld [vmem:[%s5] sm:$0x1]
    %v361 = vlaneseq
    %v362 = vshrl.u32 %v361, 7
    %v363 = vsub.s32 0, %v362
    %v364 = vrot.slane %v359, %v363
    %366 = vmatprep.subr.bf16.mxu0 0
    %367 = vmatpush1.bf16.msra.mxu0 %v358
    %368 = vmatprep.subr.bf16.mxu0 0
    %369 = vmatpush1.bf16.msra.mxu0 0
    %370 = vmatprep.subr.bf16.mxu0 0
    %371 = vmatpush1.bf16.msra.mxu0 0
    %372 = vmatprep.subr.bf16.mxu0 0
    %373 = vmatpush1.bf16.msra.mxu0 0
    %374 = vmatprep.subr.bf16.mxu0 0
    %375 = vmatpush1.bf16.msra.mxu0 0
    %376 = vmatprep.subr.bf16.mxu0 0
    %377 = vmatpush1.bf16.msra.mxu0 0
    %378 = vmatprep.subr.bf16.mxu0 0
    %379 = vmatpush1.bf16.msra.mxu0 0
    %380 = vmatprep.subr.bf16.mxu0 0
    %381 = vmatpush1.bf16.msra.mxu0 0
    %382 = vmatprep.subr.bf16.mxu0 0
    %383 = vmatpush1.bf16.msra.mxu0 0
    %384 = vmatprep.subr.bf16.mxu0 0
    %385 = vmatpush1.bf16.msra.mxu0 0
    %386 = vmatprep.subr.bf16.mxu0 0
    %387 = vmatpush1.bf16.msra.mxu0 0
    %388 = vmatprep.subr.bf16.mxu0 0
    %389 = vmatpush1.bf16.msra.mxu0 0
    %390 = vmatprep.subr.bf16.mxu0 0
    %391 = vmatpush1.bf16.msra.mxu0 0
    %392 = vmatprep.subr.bf16.mxu0 0
    %393 = vmatpush1.bf16.msra.mxu0 0
    %394 = vmatprep.subr.bf16.mxu0 0
    %395 = vmatpush1.bf16.msra.mxu0 0
    %396 = vmatprep.subr.bf16.mxu0 0
    %397 = vmatpush1.bf16.msra.mxu0 0
    %398 = vmatprep.mubr.bf16.mxu0 0
    %399 = vmatmul.mubr.bf16.gmra.mrb[0].mxu0 %v207
    %v400 = vpop.f32.mrb[0].mxu0
    %v401 = vadd.f32 %v364, %v400
    %v402 = vpop.f32.mrb[0].mxu0
    %v403 = vpop.f32.mrb[0].mxu0
    %v404 = vadd.f32 %v364, %v403
    %v405 = vpop.f32.mrb[0].mxu0
    %406 = vdwg.mxu0
    %407 = vst [vmem:[#allocation7] sm:$0xff] %v401
    %408 = vst [vmem:[#allocation7 + $0x8] sm:$0xff] %v404
    // Predicated region
    $region60: #{_fgcn_jit.1} parent=1 // pred_check
      _
    $region61: #{_fgcn_jit.1} parent=1 // pred_check_branch
      %410 = sbr.rel (0) target = $region63
    $region62: #{_fgcn_jit.1} parent=1 // pred_region
      %s412 = ssub.s32 256, 256
      %413 = vsyncadd [#allocation6], %s412
      %s414 = sshll.u32 [#allocation7], 4
      %s415 = int_to_ptr.vmem [resolvable:$true] %s414
      %420 = dma.vmem_to_hbm [thread:$0]  %s415, 256, %s6, [#allocation6], 128, 128, 8
    $region63: #{_fgcn_jit.1} parent=1 // pred_fallthru
      _
    // Predicated region
    $region64: #{_fgcn_jit.1} parent=1 // pred_check
      _
    $region65: #{_fgcn_jit.1} parent=1 // pred_check_branch
      %422 = sbr.rel (0) target = $region67
    $region66: #{_fgcn_jit.1} parent=1 // pred_region
      %423 = dma.done [#allocation6], 256
    $region67: #{_fgcn_jit.1} parent=1 // pred_fallthru
      _
    %424 = vsyncpa [#allocation5], 1
    %425 = vsyncpa [#allocation6], 1
  %426 = vsyncmov [#allocation3]
  %s427 = vpop.sfrf %426
  %p428 = scmp.eq.s32.totalorder %s427, 0
  %p429 = pneg %p428
  %431 = shalt.err (%p429)

</llo_original>
